<compile_context>
chip_gen: v6e
topology: v6e:2x2x1
jax: 0.10.0
libtpu: 0.0.40
codegen_flags: <defaults>
</compile_context>

<pallas_src>
import functools

import jax
import jax.numpy as jnp
from jax.experimental import pallas as pl
from jax.experimental.pallas import tpu as pltpu


# Sublane alignment for the row tile: a multiple of 16 keeps the in-kernel
# (2, tm, d1) -> (2*tm, d1) reshape and the h[:tm]/h[tm:] slices free (views,
# no VMEM relayout) for both f32 (8-row) and bf16 (16-row) sublane packs.
# Bump to 32 if int8/fp8 tiles are ever fed to the MXU.
_ROW_ALIGN = 16
_TM_ALIGN = 256          # MXU tile granularity on v6e/v7x (128 suffices on v5e)
_LANE = 128


def _round_up(n, m):
    return ((n + m - 1) // m) * m


def mlp_kernel(x_ref, w11_ref, b11_ref, w2a_ref, w2b_ref, b2_ref,
               w3_ref, b3_ref, out_ref):
    _, tm, d1 = x_ref.shape
    cdt = w11_ref.dtype                      # dtype fed to the MXU (bf16 / f32)

    # x arrives as f32; cast the tile here (hidden under the MXU).  The reshape
    # is free because tm is a multiple of the sublane pack (_ROW_ALIGN).
    x_flat = x_ref[...].reshape(2 * tm, d1).astype(cdt)

    # Fused fc11: one (2*TM, d1) @ (d1, H) matmul covers both halves of the pair.
    h = jnp.dot(x_flat, w11_ref[...], preferred_element_type=jnp.float32)
    h = jnp.maximum(h + b11_ref[...], 0.0)   # f32 bias + ReLU epilogue

    x11 = h[:tm].astype(cdt)                 # rows that came from x[0]
    x12 = h[tm:].astype(cdt)                 # rows that came from x[1]

    # fc2 with no lane-axis concat: accumulate the two halves of w2 in f32.
    x2 = jnp.dot(x11, w2a_ref[...], preferred_element_type=jnp.float32)
    x2 = x2 + jnp.dot(x12, w2b_ref[...], preferred_element_type=jnp.float32)
    x2 = jnp.maximum(x2 + b2_ref[...], 0.0)

    # fc3 (no activation)
    x3 = jnp.dot(x2.astype(cdt), w3_ref[...], preferred_element_type=jnp.float32)
    out_ref[...] = (x3 + b3_ref[...]).astype(out_ref.dtype)


@functools.partial(jax.jit,
                   static_argnames=("block_m", "compute_dtype", "out_dtype"))
def mlp_forward(x, params, *, block_m=None, compute_dtype=jnp.bfloat16,
                out_dtype=jnp.float32):
    """x: (2, B, S, d1) float32.  Returns (B, S, d2) in out_dtype."""
    w11, b11, w2, b2, w3, b3 = params
    two, B, S, d1 = x.shape
    assert two == 2
    H = w11.shape[1]
    d2 = w3.shape[1]
    M = B * S

    cdt = jnp.dtype(compute_dtype)
    odt = jnp.dtype(out_dtype)
    cdt_b = cdt.itemsize
    out_b = odt.itemsize

    # Lane-dense output: pad d2 to a multiple of 128 (weights/bias only).  A
    # sub-128 output lane width makes every store a masked vst.msk partial
    # store -- the biggest single wall-clock lever measured.
    d2p = _round_up(d2, _LANE)
    if d2p != d2:
        w3 = jnp.pad(w3, ((0, 0), (0, d2p - d2)))
        b3 = jnp.pad(b3, ((0, 0), (0, d2p - d2)))

    # Split w2 so the kernel never concatenates along the lane axis.
    w2a, w2b = w2[:H], w2[H:]

    # MXU inputs in compute_dtype (weights are tiny; one cheap cast here).  The
    # activations x stay f32 in HBM and are cast per-tile inside the kernel.
    w11c, w2ac, w2bc, w3c = (w.astype(cdt) for w in (w11, w2a, w2b, w3))

    # ---------------- VMEM accounting (weights resident, single-buffered) ----
    # Biases stay f32; (1, N) scratch pads to (8, N) sublanes in VMEM.
    weight_bytes = ((d1 * H + 2 * H * H + H * d2p) * cdt_b
                    + 8 * (2 * H + d2p) * 4)
    if weight_bytes > (48 << 20):
        # TODO(synk): when resident weights exceed ~48 MiB (v7x has 64 MiB/TC
        # VMEM), add a second grid axis that tiles H (weights blocked on the
        # output-feature axis, fc2 handled as an 'arbitrary' split-K reduction
        # with a pl.when-guarded accumulator) instead of failing here.
        raise ValueError("MLP weights too large for the all-resident layout")

    # Per row of the (2, tm, d1) activation tile (counts the f32 intermediates,
    # which are the real VMEM hog, not just the DMA'd tiles):
    per_row = (2 * 2 * d1 * 4              # x tile, double-buffered, f32
               + 2 * d2p * out_b           # out tile, double-buffered
               + 2 * d1 * cdt_b            # in-kernel x cast
               + (8 + 3 * cdt_b + 4) * H   # h (f32) + x11/x12/x2 casts + x2 (f32)
               + 4 * d2p)                  # x3 (f32)

    try:
        phys_vmem = int(pltpu.get_tpu_info().vmem_capacity_bytes)
    except Exception:
        phys_vmem = 64 << 20               # conservative: v7x per-TC VMEM

    # ---------------- Row-tile size ------------------------------------------
    if block_m is None:
        # Fit weights once + per-row cost into ~70% of VMEM; align to 256 for
        # the 256x256 MXU (v6e/v7x; 128 suffices on v5e), cap at 2048.
        budget = max(int(phys_vmem * 0.70) - weight_bytes, 4 << 20)
        tm = max(_TM_ALIGN, (budget // per_row) // _TM_ALIGN * _TM_ALIGN)
        tm = min(tm, 2048)
    else:
        tm = _round_up(block_m, _ROW_ALIGN)
    # Never exceed the (sublane-aligned) problem size, and keep >= 2 grid steps
    # when possible so v7x's two TensorCores both get work.
    tm = min(tm,
             _round_up(M, _ROW_ALIGN),
             max(_ROW_ALIGN, _round_up(pl.cdiv(M, 2), _ROW_ALIGN)))
    grid_m = pl.cdiv(M, tm)                # partial final block handled by Pallas

    footprint = weight_bytes + per_row * tm + (2 << 20)   # + compiler scratch
    vmem_limit = int(min(max(footprint * 5 // 4, 32 << 20), phys_vmem))

    flops = 2 * M * (2 * d1 * H + 2 * H * H + H * d2p)
    bytes_accessed = (M * 2 * d1 * 4
                      + (d1 * H + 2 * H * H + H * d2p) * cdt_b
                      + (2 * H + d2p) * 4
                      + M * d2p * out_b)

    # 2-D slabs, features on the lane axis; the pair axis stays leading so one
    # BlockSpec hands the kernel matching row-tiles of x[0] and x[1].
    xp = x.reshape(2, M, d1)

    def resident(shape):
        # Constant block index + single buffer: DMA'd to VMEM once, stays
        # resident over the whole grid (no wasted double buffer).
        return pl.BlockSpec(shape, lambda *_: (0,) * len(shape),
                            pipeline_mode=pl.Buffered(1))

    out = pl.pallas_call(
        mlp_kernel,
        out_shape=jax.ShapeDtypeStruct((M, d2p), odt),
        grid_spec=pltpu.PrefetchScalarGridSpec(
            num_scalar_prefetch=0,
            grid=(grid_m,),
            in_specs=[
                pl.BlockSpec((2, tm, d1), lambda i: (0, i, 0)),  # x pair tile
                resident((d1, H)),      # w11 (stored (in, out))
                resident((1, H)),       # b11 (f32)
                resident((H, H)),       # w2 top half
                resident((H, H)),       # w2 bottom half
                resident((1, H)),       # b2  (f32)
                resident((H, d2p)),     # w3 (lane-padded)
                resident((1, d2p)),     # b3  (f32, lane-padded)
            ],
            out_specs=pl.BlockSpec((tm, d2p), lambda i: (i, 0)),
        ),
        compiler_params=pltpu.CompilerParams(
            dimension_semantics=("parallel",),
            vmem_limit_bytes=vmem_limit),
        cost_estimate=pl.CostEstimate(
            flops=flops, transcendentals=0, bytes_accessed=bytes_accessed),
    )(xp, w11c, b11, w2ac, w2bc, b2, w3c, b3)

    out = out.reshape(B, S, d2p)
    if d2p != d2:
        out = out[..., :d2]               # drop lane padding (one-time, small)
    return out


def init_params(key, d1, d2, hiddensize):
    """Deterministic init mimicking nn.Linear's U(-1/sqrt(fan_in), 1/sqrt(fan_in)).
    Weights are stored transposed: (in, out)."""
    ks = jax.random.split(key, 6)

    def lin(kw, kb, fan_in, fan_out):
        bound = 1.0 / jnp.sqrt(fan_in)
        w = jax.random.uniform(kw, (fan_in, fan_out), jnp.float32, -bound, bound)
        b = jax.random.uniform(kb, (1, fan_out), jnp.float32, -bound, bound)
        return w, b

    w11, b11 = lin(ks[0], ks[1], d1, hiddensize)
    w2, b2 = lin(ks[2], ks[3], 2 * hiddensize, hiddensize)
    w3, b3 = lin(ks[4], ks[5], hiddensize, d2)
    return (w11, b11, w2, b2, w3, b3)


if __name__ == "__main__":
    # Note: at these toy feature dims (16/32) the MXU lanes are mostly idle;
    # the kernel is written for realistic (>=128-wide) features where the
    # M-tiled, concat-free, weight-resident layout pays off.
    d1, d2, hiddensize = 16, 16, 32
    B, S = 2, 16                       # M = B*S = 32 rows

    key = jax.random.PRNGKey(0)
    kx, kp = jax.random.split(key)
    x = jax.random.normal(kx, (2, B, S, d1), jnp.float32)
    params = init_params(kp, d1, d2, hiddensize)

    # Pure-JAX reference (matches the PyTorch forward).
    w11, b11, w2, b2, w3, b3 = params
    x11 = jnp.maximum(x[0] @ w11 + b11[0], 0.0)
    x12 = jnp.maximum(x[1] @ w11 + b11[0], 0.0)
    x2 = jnp.maximum(jnp.concatenate([x11, x12], axis=-1) @ w2 + b2[0], 0.0)
    ref = x2 @ w3 + b3[0]

    # f32 MXU path; block_m=16 -> grid=(2,) exercises the M tiling, the partial
    # -block machinery and the lane padding of d2 (16 -> 128).
    out_f32 = jax.block_until_ready(
        mlp_forward(x, params, block_m=16, compute_dtype=jnp.float32))
    assert out_f32.shape == (B, S, d2)
    assert jnp.allclose(out_f32, ref, atol=1e-4, rtol=1e-4)

    # Default path: bf16 MXU inputs, f32 accumulation + epilogue, auto tile
    # size (looser tolerance is expected mixed-precision error).
    out_bf16 = jax.block_until_ready(mlp_forward(x, params))
    assert out_bf16.shape == (B, S, d2)
    assert jnp.allclose(out_bf16, ref, atol=1e-1, rtol=1e-1)

    print("KERNEL_OK")
</pallas_src>

<mosaic_0001>
module attributes {stable_mosaic.version = 11 : i64} {
  func.func @mlp_kernel(%arg0: i32, %arg1: memref<2x16x16xf32, #tpu.memory_space<vmem>>, %arg2: memref<16x32xf32, #tpu.memory_space<vmem>>, %arg3: memref<1x32xf32, #tpu.memory_space<vmem>>, %arg4: memref<32x32xf32, #tpu.memory_space<vmem>>, %arg5: memref<32x32xf32, #tpu.memory_space<vmem>>, %arg6: memref<1x32xf32, #tpu.memory_space<vmem>>, %arg7: memref<32x128xf32, #tpu.memory_space<vmem>>, %arg8: memref<1x128xf32, #tpu.memory_space<vmem>>, %arg9: memref<16x128xf32, #tpu.memory_space<vmem>>) attributes {dimension_semantics = [#tpu.dimension_semantics<parallel>], iteration_bounds = array<i64: 2>, scalar_prefetch = 0 : i64, scratch_operands = 0 : i64, tpu.core_type = #tpu.core_type<tc>, window_params = [{transform_indices = @transform_0, window_bounds = array<i64: 2, 16, 16>}, {pipeline_mode = #tpu.pipeline_mode<synchronous>, transform_indices = @transform_1, window_bounds = array<i64: 16, 32>}, {pipeline_mode = #tpu.pipeline_mode<synchronous>, transform_indices = @transform_2, window_bounds = array<i64: 1, 32>}, {pipeline_mode = #tpu.pipeline_mode<synchronous>, transform_indices = @transform_3, window_bounds = array<i64: 32, 32>}, {pipeline_mode = #tpu.pipeline_mode<synchronous>, transform_indices = @transform_4, window_bounds = array<i64: 32, 32>}, {pipeline_mode = #tpu.pipeline_mode<synchronous>, transform_indices = @transform_5, window_bounds = array<i64: 1, 32>}, {pipeline_mode = #tpu.pipeline_mode<synchronous>, transform_indices = @transform_6, window_bounds = array<i64: 32, 128>}, {pipeline_mode = #tpu.pipeline_mode<synchronous>, transform_indices = @transform_7, window_bounds = array<i64: 1, 128>}, {transform_indices = @transform_8, window_bounds = array<i64: 16, 128>}]} {
    %c0 = arith.constant 0 : index
    %c0_0 = arith.constant 0 : index
    %c0_1 = arith.constant 0 : index
    %0 = vector.load %arg1[%c0, %c0_0, %c0_1] : memref<2x16x16xf32, #tpu.memory_space<vmem>>, vector<2x16x16xf32>
    %1 = vector.shape_cast %0 : vector<2x16x16xf32> to vector<32x16xf32>
    %c0_2 = arith.constant 0 : index
    %c0_3 = arith.constant 0 : index
    %2 = vector.load %arg2[%c0_2, %c0_3] : memref<16x32xf32, #tpu.memory_space<vmem>>, vector<16x32xf32>
    %cst = arith.constant dense<0.000000e+00> : vector<32x32xf32>
    %3 = tpu.matmul %1, %2, %cst {dimension_numbers = #tpu.dot_dimension_numbers<[1], [0], [0], [1], [0, 0, 1, 1], [], []>} : vector<32x16xf32>, vector<16x32xf32>, vector<32x32xf32> -> vector<32x32xf32>
    %c0_4 = arith.constant 0 : index
    %c0_5 = arith.constant 0 : index
    %4 = vector.load %arg3[%c0_4, %c0_5] : memref<1x32xf32, #tpu.memory_space<vmem>>, vector<1x32xf32>
    %5 = vector.broadcast %4 : vector<1x32xf32> to vector<32x32xf32>
    %6 = arith.addf %3, %5 : vector<32x32xf32>
    %cst_6 = arith.constant 0.000000e+00 : f32
    %7 = vector.broadcast %cst_6 : f32 to vector<32x32xf32>
    %8 = arith.maximumf %6, %7 : vector<32x32xf32>
    %9 = vector.extract_strided_slice %8 {offsets = [0, 0], sizes = [16, 32], strides = [1, 1]} : vector<32x32xf32> to vector<16x32xf32>
    %10 = vector.extract_strided_slice %8 {offsets = [16, 0], sizes = [16, 32], strides = [1, 1]} : vector<32x32xf32> to vector<16x32xf32>
    %c0_7 = arith.constant 0 : index
    %c0_8 = arith.constant 0 : index
    %11 = vector.load %arg4[%c0_7, %c0_8] : memref<32x32xf32, #tpu.memory_space<vmem>>, vector<32x32xf32>
    %cst_9 = arith.constant dense<0.000000e+00> : vector<16x32xf32>
    %12 = tpu.matmul %9, %11, %cst_9 {dimension_numbers = #tpu.dot_dimension_numbers<[1], [0], [0], [1], [0, 0, 1, 1], [], []>} : vector<16x32xf32>, vector<32x32xf32>, vector<16x32xf32> -> vector<16x32xf32>
    %c0_10 = arith.constant 0 : index
    %c0_11 = arith.constant 0 : index
    %13 = vector.load %arg5[%c0_10, %c0_11] : memref<32x32xf32, #tpu.memory_space<vmem>>, vector<32x32xf32>
    %cst_12 = arith.constant dense<0.000000e+00> : vector<16x32xf32>
    %14 = tpu.matmul %10, %13, %cst_12 {dimension_numbers = #tpu.dot_dimension_numbers<[1], [0], [0], [1], [0, 0, 1, 1], [], []>} : vector<16x32xf32>, vector<32x32xf32>, vector<16x32xf32> -> vector<16x32xf32>
    %15 = arith.addf %12, %14 : vector<16x32xf32>
    %c0_13 = arith.constant 0 : index
    %c0_14 = arith.constant 0 : index
    %16 = vector.load %arg6[%c0_13, %c0_14] : memref<1x32xf32, #tpu.memory_space<vmem>>, vector<1x32xf32>
    %17 = vector.broadcast %16 : vector<1x32xf32> to vector<16x32xf32>
    %18 = arith.addf %15, %17 : vector<16x32xf32>
    %cst_15 = arith.constant 0.000000e+00 : f32
    %19 = vector.broadcast %cst_15 : f32 to vector<16x32xf32>
    %20 = arith.maximumf %18, %19 : vector<16x32xf32>
    %c0_16 = arith.constant 0 : index
    %c0_17 = arith.constant 0 : index
    %21 = vector.load %arg7[%c0_16, %c0_17] : memref<32x128xf32, #tpu.memory_space<vmem>>, vector<32x128xf32>
    %cst_18 = arith.constant dense<0.000000e+00> : vector<16x128xf32>
    %22 = tpu.matmul %20, %21, %cst_18 {dimension_numbers = #tpu.dot_dimension_numbers<[1], [0], [0], [1], [0, 0, 1, 1], [], []>} : vector<16x32xf32>, vector<32x128xf32>, vector<16x128xf32> -> vector<16x128xf32>
    %c0_19 = arith.constant 0 : index
    %c0_20 = arith.constant 0 : index
    %23 = vector.load %arg8[%c0_19, %c0_20] : memref<1x128xf32, #tpu.memory_space<vmem>>, vector<1x128xf32>
    %24 = vector.broadcast %23 : vector<1x128xf32> to vector<16x128xf32>
    %25 = arith.addf %22, %24 : vector<16x128xf32>
    %c0_21 = arith.constant 0 : index
    %c0_22 = arith.constant 0 : index
    %26 = vector.load %arg9[%c0_21, %c0_22] : memref<16x128xf32, #tpu.memory_space<vmem>>, vector<16x128xf32>
    tpu.vector_store %arg9[%c0_21, %c0_22], %25 {strides = array<i32>} : memref<16x128xf32, #tpu.memory_space<vmem>>, vector<16x128xf32>,
    return
  }
  func.func @transform_0(%arg0: i32) -> (i32, i32, i32) {
    %c0_i32 = arith.constant 0 : i32
    %c0_i32_0 = arith.constant 0 : i32
    %c0_i32_1 = arith.constant 0 : i32
    return %c0_i32, %arg0, %c0_i32_0 : i32, i32, i32
  }
  func.func @transform_1(%arg0: i32) -> (i32, i32) {
    %c0_i32 = arith.constant 0 : i32
    %c0_i32_0 = arith.constant 0 : i32
    %c0_i32_1 = arith.constant 0 : i32
    return %c0_i32, %c0_i32_0 : i32, i32
  }
  func.func @transform_2(%arg0: i32) -> (i32, i32) {
    %c0_i32 = arith.constant 0 : i32
    %c0_i32_0 = arith.constant 0 : i32
    %c0_i32_1 = arith.constant 0 : i32
    return %c0_i32, %c0_i32_0 : i32, i32
  }
  func.func @transform_3(%arg0: i32) -> (i32, i32) {
    %c0_i32 = arith.constant 0 : i32
    %c0_i32_0 = arith.constant 0 : i32
    %c0_i32_1 = arith.constant 0 : i32
    return %c0_i32, %c0_i32_0 : i32, i32
  }
  func.func @transform_4(%arg0: i32) -> (i32, i32) {
    %c0_i32 = arith.constant 0 : i32
    %c0_i32_0 = arith.constant 0 : i32
    %c0_i32_1 = arith.constant 0 : i32
    return %c0_i32, %c0_i32_0 : i32, i32
  }
  func.func @transform_5(%arg0: i32) -> (i32, i32) {
    %c0_i32 = arith.constant 0 : i32
    %c0_i32_0 = arith.constant 0 : i32
    %c0_i32_1 = arith.constant 0 : i32
    return %c0_i32, %c0_i32_0 : i32, i32
  }
  func.func @transform_6(%arg0: i32) -> (i32, i32) {
    %c0_i32 = arith.constant 0 : i32
    %c0_i32_0 = arith.constant 0 : i32
    %c0_i32_1 = arith.constant 0 : i32
    return %c0_i32, %c0_i32_0 : i32, i32
  }
  func.func @transform_7(%arg0: i32) -> (i32, i32) {
    %c0_i32 = arith.constant 0 : i32
    %c0_i32_0 = arith.constant 0 : i32
    %c0_i32_1 = arith.constant 0 : i32
    return %c0_i32, %c0_i32_0 : i32, i32
  }
  func.func @transform_8(%arg0: i32) -> (i32, i32) {
    %c0_i32 = arith.constant 0 : i32
    %c0_i32_0 = arith.constant 0 : i32
    return %arg0, %c0_i32 : i32, i32
  }
}

</mosaic_0001>

<llo_original>
// kernel: mlp_forward.1
$region0: #{mlp_forward.1}
  #allocation0 [shape = 'u32[]', space=smem, size = 0x4, offset = 0x4, fixed_abs, tag = 'smem constant byte address 0x4 - core index']
  #allocation1 [shape = 'u32[144,128]{1,0:T(1,128)}', space=vmem, size = 0x12000, scoped, tag = 'internal scratch']
  %s0 = inlined_call_operand.vmem [shape: f32[2,32,16], index: 0, kind: input, shape index: {}]
  %s1 = inlined_call_operand.vmem [shape: f32[16,32], index: 1, kind: input, shape index: {}]
  %s2 = inlined_call_operand.vmem [shape: f32[1,32], index: 2, kind: input, shape index: {}]
  %s3 = inlined_call_operand.vmem [shape: f32[32,32], index: 3, kind: input, shape index: {}]
  %s4 = inlined_call_operand.vmem [shape: f32[32,32], index: 4, kind: input, shape index: {}]
  %s5 = inlined_call_operand.vmem [shape: f32[1,32], index: 5, kind: input, shape index: {}]
  %s6 = inlined_call_operand.vmem [shape: f32[32,128], index: 6, kind: input, shape index: {}]
  %s7 = inlined_call_operand.vmem [shape: f32[1,128], index: 7, kind: input, shape index: {}]
  %s8 = inlined_call_operand.hbm [shape: f32[32,128], index: 8, kind: output, shape index: {}]
  %s9 = sld [smem:[#allocation0]]
  $region103: #{mlp_forward.1} parent=0
    _
  %s11 = ssub.s32 1, %s9
  %s12 = scalar_select 0, %s11, %s9
  $region1: #{mlp_forward.1} parent=0
    #allocation2 [shape = 'u8[32768]{0}', space=vmem, size = 0x8000, scoped, tag = 'input window, operand 0']
    #allocation3 [shape = 'u8[16384]{0}', space=vmem, size = 0x4000, scoped, tag = 'output window, operand 0']
    #allocation4 [shape = 's32[2]{0}', space=sflag, size = 0x8, scoped, tag = 'scoped memory for mlp_forward.1']
    %13 = vsyncpa [#allocation4], 0
    %s14 = scalar_lea.sflag [#allocation4], 1
    %15 = vsyncpa %s14, 0
    loop: start=0, step=1, limit=4
    $region2: #{mlp_forward.1} parent=1 // loop_pre_header
      _
    $region3: #{mlp_forward.1} parent=1 // loop_header
      %s17 = sphi 0, %s21
      %p18 = scmp.ge.s32.totalorder %s17, 4
      %s27 = sphi 0, %s29
      %s30 = sphi 0, %s27
      %s31 = sphi 0, %s30
      %s47 = sphi 0, %s31
      %s51 = sphi 0, %s51
      %s53 = sphi 0, %s51
      %s54 = sphi 0, %s53
      %s68 = sphi 0, %s54
      %s72 = sphi 0, %s72
      %s74 = sphi 0, %s72
      %s75 = sphi 0, %s74
      %s89 = sphi 0, %s75
      %s93 = sphi 0, %s93
      %s95 = sphi 0, %s93
      %s96 = sphi 0, %s95
      %s110 = sphi 0, %s96
      %s114 = sphi 0, %s114
      %s116 = sphi 0, %s114
      %s117 = sphi 0, %s116
      %s131 = sphi 0, %s117
      %s135 = sphi 0, %s135
      %s137 = sphi 0, %s135
      %s138 = sphi 0, %s137
      %s152 = sphi 0, %s138
      %s156 = sphi 0, %s156
      %s158 = sphi 0, %s156
      %s159 = sphi 0, %s158
      %s173 = sphi 0, %s159
      %s177 = sphi 0, %s177
      %s179 = sphi 0, %s177
      %s180 = sphi 0, %s179
      %s194 = sphi 0, %s180
      %s200 = sphi 0, %s202
      %s203 = sphi 0, %s200
      %s204 = sphi 0, %s203
      %s220 = sphi 0, %s204
    $region4: #{mlp_forward.1} parent=1 // loop_header_branch
      %20 = sbr.rel (%p18) target = $region8
    $region5: #{mlp_forward.1} parent=1 // loop_body
      %s22 = ssub.s32 %s17, 1
      %s23 = ssub.s32 %s17, 2
      %s24 = sadd.s32 %s17, 1
      %s25 = ssub.s32 %s17, %s24
      %p26 = scmp.eq.s32.totalorder %s25, 0
      %s28 = sadd.s32 %s27, 1
      %s29 = scalar_select %p26, %s27, %s28
      %p32 = pneg %p26
      %p33 = scmp.eq.s32.totalorder %s17, 1
      %p34 = por %p32, %p33
      %p35 = scmp.ne.s32.totalorder %s27, %s30
      %p36 = scmp.eq.s32.totalorder %s17, 0
      %p37 = por %p35, %p36
      %p38 = scmp.ne.s32.totalorder %s27, %s30
      %p39 = scmp.eq.s32.totalorder %s22, 1
      %p40 = por %p38, %p39
      %p41 = scmp.ne.s32.totalorder %s30, %s31
      %p42 = scmp.eq.s32.totalorder %s22, 0
      %p43 = por %p41, %p42
      %p44 = scmp.ne.s32.totalorder %s30, %s31
      %p45 = scmp.eq.s32.totalorder %s23, 1
      %p46 = por %p44, %p45
      %p48 = scmp.ne.s32.totalorder %s31, %s47
      %p49 = scmp.eq.s32.totalorder %s23, 0
      %p50 = por %p48, %p49
      %s52 = sadd.s32 %s51, 1
      %p55 = scmp.eq.s32.totalorder %s17, 1
      %p56 = scmp.ne.s32.totalorder %s51, %s53
      %p57 = scmp.eq.s32.totalorder %s17, 0
      %p58 = por %p56, %p57
      %p59 = scmp.ne.s32.totalorder %s51, %s53
      %p60 = scmp.eq.s32.totalorder %s22, 1
      %p61 = por %p59, %p60
      %p62 = scmp.ne.s32.totalorder %s53, %s54
      %p63 = scmp.eq.s32.totalorder %s22, 0
      %p64 = por %p62, %p63
      %p65 = scmp.ne.s32.totalorder %s53, %s54
      %p66 = scmp.eq.s32.totalorder %s23, 1
      %p67 = por %p65, %p66
      %p69 = scmp.ne.s32.totalorder %s54, %s68
      %p70 = scmp.eq.s32.totalorder %s23, 0
      %p71 = por %p69, %p70
      %s73 = sadd.s32 %s72, 1
      %p76 = scmp.eq.s32.totalorder %s17, 1
      %p77 = scmp.ne.s32.totalorder %s72, %s74
      %p78 = scmp.eq.s32.totalorder %s17, 0
      %p79 = por %p77, %p78
      %p80 = scmp.ne.s32.totalorder %s72, %s74
      %p81 = scmp.eq.s32.totalorder %s22, 1
      %p82 = por %p80, %p81
      %p83 = scmp.ne.s32.totalorder %s74, %s75
      %p84 = scmp.eq.s32.totalorder %s22, 0
      %p85 = por %p83, %p84
      %p86 = scmp.ne.s32.totalorder %s74, %s75
      %p87 = scmp.eq.s32.totalorder %s23, 1
      %p88 = por %p86, %p87
      %p90 = scmp.ne.s32.totalorder %s75, %s89
      %p91 = scmp.eq.s32.totalorder %s23, 0
      %p92 = por %p90, %p91
      %s94 = sadd.s32 %s93, 1
      %p97 = scmp.eq.s32.totalorder %s17, 1
      %p98 = scmp.ne.s32.totalorder %s93, %s95
      %p99 = scmp.eq.s32.totalorder %s17, 0
      %p100 = por %p98, %p99
      %p101 = scmp.ne.s32.totalorder %s93, %s95
      %p102 = scmp.eq.s32.totalorder %s22, 1
      %p103 = por %p101, %p102
      %p104 = scmp.ne.s32.totalorder %s95, %s96
      %p105 = scmp.eq.s32.totalorder %s22, 0
      %p106 = por %p104, %p105
      %p107 = scmp.ne.s32.totalorder %s95, %s96
      %p108 = scmp.eq.s32.totalorder %s23, 1
      %p109 = por %p107, %p108
      %p111 = scmp.ne.s32.totalorder %s96, %s110
      %p112 = scmp.eq.s32.totalorder %s23, 0
      %p113 = por %p111, %p112
      %s115 = sadd.s32 %s114, 1
      %p118 = scmp.eq.s32.totalorder %s17, 1
      %p119 = scmp.ne.s32.totalorder %s114, %s116
      %p120 = scmp.eq.s32.totalorder %s17, 0
      %p121 = por %p119, %p120
      %p122 = scmp.ne.s32.totalorder %s114, %s116
      %p123 = scmp.eq.s32.totalorder %s22, 1
      %p124 = por %p122, %p123
      %p125 = scmp.ne.s32.totalorder %s116, %s117
      %p126 = scmp.eq.s32.totalorder %s22, 0
      %p127 = por %p125, %p126
      %p128 = scmp.ne.s32.totalorder %s116, %s117
      %p129 = scmp.eq.s32.totalorder %s23, 1
      %p130 = por %p128, %p129
      %p132 = scmp.ne.s32.totalorder %s117, %s131
      %p133 = scmp.eq.s32.totalorder %s23, 0
      %p134 = por %p132, %p133
      %s136 = sadd.s32 %s135, 1
      %p139 = scmp.eq.s32.totalorder %s17, 1
      %p140 = scmp.ne.s32.totalorder %s135, %s137
      %p141 = scmp.eq.s32.totalorder %s17, 0
      %p142 = por %p140, %p141
      %p143 = scmp.ne.s32.totalorder %s135, %s137
      %p144 = scmp.eq.s32.totalorder %s22, 1
      %p145 = por %p143, %p144
      %p146 = scmp.ne.s32.totalorder %s137, %s138
      %p147 = scmp.eq.s32.totalorder %s22, 0
      %p148 = por %p146, %p147
      %p149 = scmp.ne.s32.totalorder %s137, %s138
      %p150 = scmp.eq.s32.totalorder %s23, 1
      %p151 = por %p149, %p150
      %p153 = scmp.ne.s32.totalorder %s138, %s152
      %p154 = scmp.eq.s32.totalorder %s23, 0
      %p155 = por %p153, %p154
      %s157 = sadd.s32 %s156, 1
      %p160 = scmp.eq.s32.totalorder %s17, 1
      %p161 = scmp.ne.s32.totalorder %s156, %s158
      %p162 = scmp.eq.s32.totalorder %s17, 0
      %p163 = por %p161, %p162
      %p164 = scmp.ne.s32.totalorder %s156, %s158
      %p165 = scmp.eq.s32.totalorder %s22, 1
      %p166 = por %p164, %p165
      %p167 = scmp.ne.s32.totalorder %s158, %s159
      %p168 = scmp.eq.s32.totalorder %s22, 0
      %p169 = por %p167, %p168
      %p170 = scmp.ne.s32.totalorder %s158, %s159
      %p171 = scmp.eq.s32.totalorder %s23, 1
      %p172 = por %p170, %p171
      %p174 = scmp.ne.s32.totalorder %s159, %s173
      %p175 = scmp.eq.s32.totalorder %s23, 0
      %p176 = por %p174, %p175
      %s178 = sadd.s32 %s177, 1
      %p181 = scmp.eq.s32.totalorder %s17, 1
      %p182 = scmp.ne.s32.totalorder %s177, %s179
      %p183 = scmp.eq.s32.totalorder %s17, 0
      %p184 = por %p182, %p183
      %p185 = scmp.ne.s32.totalorder %s177, %s179
      %p186 = scmp.eq.s32.totalorder %s22, 1
      %p187 = por %p185, %p186
      %p188 = scmp.ne.s32.totalorder %s179, %s180
      %p189 = scmp.eq.s32.totalorder %s22, 0
      %p190 = por %p188, %p189
      %p191 = scmp.ne.s32.totalorder %s179, %s180
      %p192 = scmp.eq.s32.totalorder %s23, 1
      %p193 = por %p191, %p192
      %p195 = scmp.ne.s32.totalorder %s180, %s194
      %p196 = scmp.eq.s32.totalorder %s23, 0
      %p197 = por %p195, %p196
      %s198 = ssub.s32 %s17, %s24
      %p199 = scmp.eq.s32.totalorder %s198, 0
      %s201 = sadd.s32 %s200, 1
      %s202 = scalar_select %p199, %s200, %s201
      %p205 = pneg %p199
      %p206 = scmp.eq.s32.totalorder %s17, 1
      %p207 = por %p205, %p206
      %p208 = scmp.ne.s32.totalorder %s200, %s203
      %p209 = scmp.eq.s32.totalorder %s17, 0
      %p210 = por %p208, %p209
      %p211 = scmp.ne.s32.totalorder %s200, %s203
      %p212 = scmp.eq.s32.totalorder %s22, 1
      %p213 = por %p211, %p212
      %p214 = scmp.ne.s32.totalorder %s203, %s204
      %p215 = scmp.eq.s32.totalorder %s22, 0
      %p216 = por %p214, %p215
      %p217 = scmp.ne.s32.totalorder %s203, %s204
      %p218 = scmp.eq.s32.totalorder %s23, 1
      %p219 = por %p217, %p218
      %p221 = scmp.ne.s32.totalorder %s204, %s220
      %p222 = scmp.eq.s32.totalorder %s23, 0
      %p223 = por %p221, %p222
      %p224 = scmp.le.s32.totalorder 1, %s17
      %p225 = scmp.lt.s32.totalorder %s17, 3
      %p226 = pnand %p224, %p225
      %p227 = pneg %p226
      // Predicated region
      $region9: #{mlp_forward.1} parent=5 // pred_check
        _
      $region10: #{mlp_forward.1} parent=5 // pred_check_branch
        %229 = sbr.rel (%p226) target = $region12
      $region11: #{mlp_forward.1} parent=5 // pred_region
        %s230 = ssub.s32 %s17, 1
        // Predicated region
        $region13: #{mlp_forward.1} parent=11 // pred_check
          %p231 = pneg %p64
        $region14: #{mlp_forward.1} parent=11 // pred_check_branch
          %233 = sbr.rel (%p231) target = $region16
        $region15: #{mlp_forward.1} parent=11 // pred_region
          _
        $region16: #{mlp_forward.1} parent=11 // pred_fallthru
          _
        // Predicated region
        $region17: #{mlp_forward.1} parent=11 // pred_check
          %p234 = pneg %p85
        $region18: #{mlp_forward.1} parent=11 // pred_check_branch
          %236 = sbr.rel (%p234) target = $region20
        $region19: #{mlp_forward.1} parent=11 // pred_region
          _
        $region20: #{mlp_forward.1} parent=11 // pred_fallthru
          _
        // Predicated region
        $region21: #{mlp_forward.1} parent=11 // pred_check
          %p237 = pneg %p106
        $region22: #{mlp_forward.1} parent=11 // pred_check_branch
          %239 = sbr.rel (%p237) target = $region24
        $region23: #{mlp_forward.1} parent=11 // pred_region
          _
        $region24: #{mlp_forward.1} parent=11 // pred_fallthru
          _
        // Predicated region
        $region25: #{mlp_forward.1} parent=11 // pred_check
          %p240 = pneg %p127
        $region26: #{mlp_forward.1} parent=11 // pred_check_branch
          %242 = sbr.rel (%p240) target = $region28
        $region27: #{mlp_forward.1} parent=11 // pred_region
          _
        $region28: #{mlp_forward.1} parent=11 // pred_fallthru
          _
        // Predicated region
        $region29: #{mlp_forward.1} parent=11 // pred_check
          %p243 = pneg %p148
        $region30: #{mlp_forward.1} parent=11 // pred_check_branch
          %245 = sbr.rel (%p243) target = $region32
        $region31: #{mlp_forward.1} parent=11 // pred_region
          _
        $region32: #{mlp_forward.1} parent=11 // pred_fallthru
          _
        // Predicated region
        $region33: #{mlp_forward.1} parent=11 // pred_check
          %p246 = pneg %p169
        $region34: #{mlp_forward.1} parent=11 // pred_check_branch
          %248 = sbr.rel (%p246) target = $region36
        $region35: #{mlp_forward.1} parent=11 // pred_region
          _
        $region36: #{mlp_forward.1} parent=11 // pred_fallthru
          _
        // Predicated region
        $region37: #{mlp_forward.1} parent=11 // pred_check
          %p249 = pneg %p190
        $region38: #{mlp_forward.1} parent=11 // pred_check_branch
          %251 = sbr.rel (%p249) target = $region40
        $region39: #{mlp_forward.1} parent=11 // pred_region
          _
        $region40: #{mlp_forward.1} parent=11 // pred_fallthru
          _
      $region12: #{mlp_forward.1} parent=5 // pred_fallthru
        _
      %p252 = scmp.lt.s32.totalorder %s17, 2
      // Predicated region
      $region41: #{mlp_forward.1} parent=5 // pred_check
        %p253 = pneg %p252
      $region42: #{mlp_forward.1} parent=5 // pred_check_branch
        %255 = sbr.rel (%p253) target = $region44
      $region43: #{mlp_forward.1} parent=5 // pred_region
        // Predicated region
        $region45: #{mlp_forward.1} parent=43 // pred_check
          %p256 = pneg %p37
        $region46: #{mlp_forward.1} parent=43 // pred_check_branch
          %258 = sbr.rel (%p256) target = $region48
        $region47: #{mlp_forward.1} parent=43 // pred_region
          %s259 = sand.u32 %s27, 1
          %s260 = sand.u32 %s27, 1
          %s261 = smul.addr %s260, 32
          %s262 = scalar_lea.vmem [#allocation2], %s261
          %s263 = smul.u32 2, %s17
          %s264 = smul.addr %s263, 8
          %s265 = scalar_lea.vmem %s0, %s264
          // Predicated region
          $region49: #{mlp_forward.1} parent=47 // pred_check
            _
          $region50: #{mlp_forward.1} parent=47 // pred_check_branch
            %267 = sbr.rel (0) target = $region52
          $region51: #{mlp_forward.1} parent=47 // pred_region
            // Predicated region
            $region53: #{mlp_forward.1} parent=51 // pred_check
              _
            $region54: #{mlp_forward.1} parent=51 // pred_check_branch
              %269 = sbr.rel (0) target = $region56
            $region55: #{mlp_forward.1} parent=51 // pred_region
              // Predicated region
              $region68: #{mlp_forward.1} parent=55 // pred_check
                _
              $region69: #{mlp_forward.1} parent=55 // pred_check_branch
                %291 = sbr.rel (0) target = $region71
              $region70: #{mlp_forward.1} parent=55 // pred_region
                loop: start=0, step=1, limit=1
                $region72: #{mlp_forward.1} parent=70 // loop_pre_header
                  _
                $region73: #{mlp_forward.1} parent=70 // loop_header
                  %s293 = sphi 0, %s297
                  %p294 = scmp.ge.s32.totalorder %s293, 1
                  %s298 = sphi %s265, %s265
                  %s299 = sphi %s262, %s262
                $region74: #{mlp_forward.1} parent=70 // loop_header_branch
                  %296 = sbr.rel (%p294) target = $region78
                $region75: #{mlp_forward.1} parent=70 // loop_body
                  %v300 = vld [vmem:[%s298] sm:$0xff]
                  %301 = vst [vmem:[%s299] sm:$0xff] %v300
                  %v302 = vld [vmem:[%s298 + $0x8] sm:$0xff]
                  %303 = vst [vmem:[%s299 + $0x8] sm:$0xff] %v302
                  %v304 = vld [vmem:[%s298 + $0x20] sm:$0xff]
                  %305 = vst [vmem:[%s299 + $0x10] sm:$0xff] %v304
                  %v306 = vld [vmem:[%s298 + $0x28] sm:$0xff]
                  %307 = vst [vmem:[%s299 + $0x18] sm:$0xff] %v306
                $region76: #{mlp_forward.1} parent=70 // loop_footer
                  %s297 = sadd.s32 1, %s293
                $region77: #{mlp_forward.1} parent=70 // loop_footer_branch
                  %292 = sbr.rel target = $region73
                $region78: #{mlp_forward.1} parent=70 // loop_exit
                  _
              $region71: #{mlp_forward.1} parent=55 // pred_fallthru
                _
              // Predicated region
              $region79: #{mlp_forward.1} parent=55 // pred_check
                _
              $region80: #{mlp_forward.1} parent=55 // pred_check_branch
                %309 = sbr.rel target = $region82
              $region81: #{mlp_forward.1} parent=55 // pred_region
                _
              $region82: #{mlp_forward.1} parent=55 // pred_fallthru
                _
            $region56: #{mlp_forward.1} parent=51 // pred_fallthru
              _
            // Predicated region
            $region57: #{mlp_forward.1} parent=51 // pred_check
              _
            $region58: #{mlp_forward.1} parent=51 // pred_check_branch
              %271 = sbr.rel target = $region60
            $region59: #{mlp_forward.1} parent=51 // pred_region
              %s273 = ssub.s32 256, 1
              loop: start=0, step=1, limit=1
              $region61: #{mlp_forward.1} parent=59 // loop_pre_header
                _
              $region62: #{mlp_forward.1} parent=59 // loop_header
                %s275 = sphi 0, %s279
                %p276 = scmp.ge.s32.totalorder %s275, 1
                %s280 = sphi %s265, %s265
                %s281 = sphi %s262, %s262
              $region63: #{mlp_forward.1} parent=59 // loop_header_branch
                %278 = sbr.rel (%p276) target = $region67
              $region64: #{mlp_forward.1} parent=59 // loop_body
                %v282 = vld [vmem:[%s280] sm:%s273]
                %283 = vst [vmem:[%s281] sm:%s273] %v282
                %v284 = vld [vmem:[%s280 + $0x8] sm:%s273]
                %285 = vst [vmem:[%s281 + $0x8] sm:%s273] %v284
                %v286 = vld [vmem:[%s280 + $0x20] sm:%s273]
                %287 = vst [vmem:[%s281 + $0x10] sm:%s273] %v286
                %v288 = vld [vmem:[%s280 + $0x28] sm:%s273]
                %289 = vst [vmem:[%s281 + $0x18] sm:%s273] %v288
              $region65: #{mlp_forward.1} parent=59 // loop_footer
                %s279 = sadd.s32 1, %s275
              $region66: #{mlp_forward.1} parent=59 // loop_footer_branch
                %274 = sbr.rel target = $region62
              $region67: #{mlp_forward.1} parent=59 // loop_exit
                _
            $region60: #{mlp_forward.1} parent=51 // pred_fallthru
              _
          $region52: #{mlp_forward.1} parent=47 // pred_fallthru
            _
          %310 = vnop
        $region48: #{mlp_forward.1} parent=43 // pred_fallthru
          _
      $region44: #{mlp_forward.1} parent=5 // pred_fallthru
        _
      %p311 = scmp.le.s32.totalorder 1, %s17
      %p312 = scmp.lt.s32.totalorder %s17, 3
      %p313 = pnand %p311, %p312
      %p314 = pneg %p313
      // Predicated region
      $region83: #{mlp_forward.1} parent=5 // pred_check
        _
      $region84: #{mlp_forward.1} parent=5 // pred_check_branch
        %316 = sbr.rel (%p313) target = $region86
      $region85: #{mlp_forward.1} parent=5 // pred_region
        %s317 = ssub.s32 %s17, 1
        %s318 = sand.u32 %s30, 1
        %s319 = sand.u32 %s30, 1
        %s320 = smul.addr %s319, 32
        %s321 = scalar_lea.vmem [#allocation2], %s320
        // Predicated region
        $region87: #{mlp_forward.1} parent=85 // pred_check
          %p322 = pneg %p43
        $region88: #{mlp_forward.1} parent=85 // pred_check_branch
          %324 = sbr.rel (%p322) target = $region90
        $region89: #{mlp_forward.1} parent=85 // pred_region
          _
        $region90: #{mlp_forward.1} parent=85 // pred_fallthru
          _
        %s325 = sand.u32 %s30, 1
        %s326 = sand.u32 %s30, 1
        %s327 = smul.addr %s326, 32
        %s328 = scalar_lea.vmem [#allocation2], %s327
        %p329 = pneg %p43
        %p330 = pneg %p40
        %p331 = pneg %p64
        %p332 = pneg %p61
        %p333 = pneg %p85
        %p334 = pneg %p82
        %p335 = pneg %p106
        %p336 = pneg %p103
        %p337 = pneg %p127
        %p338 = pneg %p124
        %p339 = pneg %p148
        %p340 = pneg %p145
        %p341 = pneg %p169
        %p342 = pneg %p166
        %p343 = pneg %p190
        %p344 = pneg %p187
        %p345 = pneg %p216
        %p346 = pneg %p213
        %s347 = sand.u32 %s203, 1
        %s348 = scalar_lea.sflag [#allocation4], %s347
        %s349 = sand.u32 %s203, 1
        %s350 = smul.addr %s349, 16
        %s351 = scalar_lea.vmem [#allocation3], %s350
        %s352 = smul.u32 2, %s22
        %s353 = smul.u32 2, %s22
        %v354 = vld [vmem:[%s321] sm:$0xff]
        %v355 = vld [vmem:[%s321 + $0x8] sm:$0xff]
        %v356 = vld [vmem:[%s321 + $0x10] sm:$0xff]
        %v357 = vld [vmem:[%s321 + $0x18] sm:$0xff]
        %v358 = vld [vmem:[%s1] sm:$0xff]
        %v359 = vld [vmem:[%s1 + $0x8] sm:$0xff]
        %v360 = vld [vmem:[%s2] sm:$0x1]
        %v362 = vlaneseq
        %v363 = vshrl.u32 %v362, 7
        %v364 = vsub.s32 0, %v363
        %v365 = vrot.slane %v360, %v364
        %vm367 = vcmask 130048
        %v369 = vsel %vm367, %v354, 0
        %v372 = vsel %vm367, %v355, 0
        %v375 = vsel %vm367, %v356, 0
        %v378 = vsel %vm367, %v357, 0
        %380 = vmatprep.subr.mxu0 0.0
        %381 = vmatpush1.msra.mxu0 0.0
        %382 = vmatprep.subr.mxu0 0.0
        %383 = vmatpush1.msra.mxu0 0.0
        %384 = vmatprep.subr.mxu0 0.0
        %385 = vmatpush1.msra.mxu0 0.0
        %386 = vmatprep.subr.mxu0 0.0
        %387 = vmatpush1.msra.mxu0 0.0
        %388 = vmatprep.subr.mxu0 0.0
        %389 = vmatpush1.msra.mxu0 0.0
        %390 = vmatprep.subr.mxu0 0.0
        %391 = vmatpush1.msra.mxu0 0.0
        %392 = vmatprep.subr.mxu0 0.0
        %393 = vmatpush1.msra.mxu0 0.0
        %394 = vmatprep.subr.mxu0 0.0
        %395 = vmatpush1.msra.mxu0 0.0
        %396 = vmatprep.subr.mxu0 0.0
        %397 = vmatpush1.msra.mxu0 0.0
        %398 = vmatprep.subr.mxu0 0.0
        %399 = vmatpush1.msra.mxu0 0.0
        %400 = vmatprep.subr.mxu0 0.0
        %401 = vmatpush1.msra.mxu0 0.0
        %402 = vmatprep.subr.mxu0 0.0
        %403 = vmatpush1.msra.mxu0 0.0
        %404 = vmatprep.subr.mxu0 0.0
        %405 = vmatpush1.msra.mxu0 0.0
        %406 = vmatprep.subr.mxu0 0.0
        %407 = vmatpush1.msra.mxu0 0.0
        %408 = vmatprep.subr.mxu0 0.0
        %409 = vmatpush1.msra.mxu0 %v359
        %410 = vmatprep.subr.mxu0 0.0
        %411 = vmatpush1.msra.mxu0 %v358
        %412 = vmatprep.subr.mxu0 0.0
        %413 = vmatpush2.msra.mxu0 0.0
        %414 = vmatprep.subr.mxu0 0.0
        %415 = vmatpush2.msra.mxu0 0.0
        %416 = vmatprep.subr.mxu0 0.0
        %417 = vmatpush2.msra.mxu0 0.0
        %418 = vmatprep.subr.mxu0 0.0
        %419 = vmatpush2.msra.mxu0 0.0
        %420 = vmatprep.subr.mxu0 0.0
        %421 = vmatpush2.msra.mxu0 0.0
        %422 = vmatprep.subr.mxu0 0.0
        %423 = vmatpush2.msra.mxu0 0.0
        %424 = vmatprep.subr.mxu0 0.0
        %425 = vmatpush2.msra.mxu0 0.0
        %426 = vmatprep.subr.mxu0 0.0
        %427 = vmatpush2.msra.mxu0 0.0
        %428 = vmatprep.subr.mxu0 0.0
        %429 = vmatpush2.msra.mxu0 0.0
        %430 = vmatprep.subr.mxu0 0.0
        %431 = vmatpush2.msra.mxu0 0.0
        %432 = vmatprep.subr.mxu0 0.0
        %433 = vmatpush2.msra.mxu0 0.0
        %434 = vmatprep.subr.mxu0 0.0
        %435 = vmatpush2.msra.mxu0 0.0
        %436 = vmatprep.subr.mxu0 0.0
        %437 = vmatpush2.msra.mxu0 0.0
        %438 = vmatprep.subr.mxu0 0.0
        %439 = vmatpush2.msra.mxu0 0.0
        %440 = vmatprep.subr.mxu0 0.0
        %441 = vmatpush2.msra.mxu0 0.0
        %442 = vmatprep.subr.mxu0 0.0
        %443 = vmatpush2.msra.mxu0 0.0
        %444 = vmatprep.mubr.f32.mxu0 0.0
        %445 = vmatmul.mubr.f32.gmra.mxu0 %v369
        %v446 = vpop.f32.mrf.mxu0
        %v447 = vadd.f32 %v365, %v446
        %v448 = vpop.f32.mrf.mxu0
        %449 = vmatprep.mubr.f32.mxu0 0.0
        %450 = vmatmul.mubr.f32.gmra.mxu0 %v372
        %v451 = vpop.f32.mrf.mxu0
        %v452 = vadd.f32 %v365, %v451
        %v453 = vpop.f32.mrf.mxu0
        %454 = vmatprep.mubr.f32.mxu0 0.0
        %455 = vmatmul.mubr.f32.gmra.mxu0 %v375
        %v456 = vpop.f32.mrf.mxu0
        %v457 = vadd.f32 %v365, %v456
        %v458 = vpop.f32.mrf.mxu0
        %459 = vmatprep.mubr.f32.mxu0 0.0
        %460 = vmatmul.mubr.f32.gmra.mxu0 %v378
        %v461 = vpop.f32.mrf.mxu0
        %v462 = vadd.f32 %v365, %v461
        %v463 = vpop.f32.mrf.mxu0
        %464 = vdwg.mxu0
        %v465 = vmax.f32 %v447, 0.0
        %v466 = vmax.f32 %v452, 0.0
        %v467 = vmax.f32 %v457, 0.0
        %v468 = vmax.f32 %v462, 0.0
        %v469 = vld [vmem:[%s3] sm:$0xff]
        %v470 = vld [vmem:[%s3 + $0x8] sm:$0xff]
        %v471 = vld [vmem:[%s3 + $0x10] sm:$0xff]
        %v472 = vld [vmem:[%s3 + $0x18] sm:$0xff]
        %v473 = vld [vmem:[%s4] sm:$0xff]
        %v474 = vld [vmem:[%s4 + $0x8] sm:$0xff]
        %v475 = vld [vmem:[%s4 + $0x10] sm:$0xff]
        %v476 = vld [vmem:[%s4 + $0x18] sm:$0xff]
        %vm477 = vcmask 261120
        %v479 = vsel %vm477, %v467, 0
        %v482 = vsel %vm477, %v468, 0
        %484 = vmatprep.subr.mxu0 0.0
        %485 = vmatpush1.msra.mxu0 0.0
        %486 = vmatprep.subr.mxu0 0.0
        %487 = vmatpush1.msra.mxu0 0.0
        %488 = vmatprep.subr.mxu0 0.0
        %489 = vmatpush1.msra.mxu0 0.0
        %490 = vmatprep.subr.mxu0 0.0
        %491 = vmatpush1.msra.mxu0 0.0
        %492 = vmatprep.subr.mxu0 0.0
        %493 = vmatpush1.msra.mxu0 0.0
        %494 = vmatprep.subr.mxu0 0.0
        %495 = vmatpush1.msra.mxu0 0.0
        %496 = vmatprep.subr.mxu0 0.0
        %497 = vmatpush1.msra.mxu0 0.0
        %498 = vmatprep.subr.mxu0 0.0
        %499 = vmatpush1.msra.mxu0 0.0
        %500 = vmatprep.subr.mxu0 0.0
        %501 = vmatpush1.msra.mxu0 0.0
        %502 = vmatprep.subr.mxu0 0.0
        %503 = vmatpush1.msra.mxu0 0.0
        %504 = vmatprep.subr.mxu0 0.0
        %505 = vmatpush1.msra.mxu0 0.0
        %506 = vmatprep.subr.mxu0 0.0
        %507 = vmatpush1.msra.mxu0 0.0
        %508 = vmatprep.subr.mxu0 0.0
        %509 = vmatpush1.msra.mxu0 %v476
        %510 = vmatprep.subr.mxu0 0.0
        %511 = vmatpush1.msra.mxu0 %v475
        %512 = vmatprep.subr.mxu0 0.0
        %513 = vmatpush1.msra.mxu0 %v474
        %514 = vmatprep.subr.mxu0 0.0
        %515 = vmatpush1.msra.mxu0 %v473
        %516 = vmatprep.subr.mxu0 0.0
        %517 = vmatpush2.msra.mxu0 0.0
        %518 = vmatprep.subr.mxu0 0.0
        %519 = vmatpush2.msra.mxu0 0.0
        %520 = vmatprep.subr.mxu0 0.0
        %521 = vmatpush2.msra.mxu0 0.0
        %522 = vmatprep.subr.mxu0 0.0
        %523 = vmatpush2.msra.mxu0 0.0
        %524 = vmatprep.subr.mxu0 0.0
        %525 = vmatpush2.msra.mxu0 0.0
        %526 = vmatprep.subr.mxu0 0.0
        %527 = vmatpush2.msra.mxu0 0.0
        %528 = vmatprep.subr.mxu0 0.0
        %529 = vmatpush2.msra.mxu0 0.0
        %530 = vmatprep.subr.mxu0 0.0
        %531 = vmatpush2.msra.mxu0 0.0
        %532 = vmatprep.subr.mxu0 0.0
        %533 = vmatpush2.msra.mxu0 0.0
        %534 = vmatprep.subr.mxu0 0.0
        %535 = vmatpush2.msra.mxu0 0.0
        %536 = vmatprep.subr.mxu0 0.0
        %537 = vmatpush2.msra.mxu0 0.0
        %538 = vmatprep.subr.mxu0 0.0
        %539 = vmatpush2.msra.mxu0 0.0
        %540 = vmatprep.subr.mxu0 0.0
        %541 = vmatpush2.msra.mxu0 0.0
        %542 = vmatprep.subr.mxu0 0.0
        %543 = vmatpush2.msra.mxu0 0.0
        %544 = vmatprep.subr.mxu0 0.0
        %545 = vmatpush2.msra.mxu0 0.0
        %546 = vmatprep.subr.mxu0 0.0
        %547 = vmatpush2.msra.mxu0 0.0
        %548 = vmatprep.mubr.f32.mxu0 0.0
        %549 = vmatmul.mubr.f32.gmra.mxu0 %v479
        %v550 = vpop.f32.mrf.mxu0
        %v551 = vadd.f32 0.0, %v550
        %v552 = vpop.f32.mrf.mxu0
        %553 = vmatprep.mubr.f32.mxu0 0.0
        %554 = vmatmul.mubr.f32.gmra.mxu0 %v482
        %v555 = vpop.f32.mrf.mxu0
        %v556 = vadd.f32 0.0, %v555
        %v557 = vpop.f32.mrf.mxu0
        %558 = vdwg.mxu0
        %v560 = vsel %vm477, %v465, 0
        %v563 = vsel %vm477, %v466, 0
        %565 = vmatprep.subr.mxu0 0.0
        %566 = vmatpush1.msra.mxu0 0.0
        %567 = vmatprep.subr.mxu0 0.0
        %568 = vmatpush1.msra.mxu0 0.0
        %569 = vmatprep.subr.mxu0 0.0
        %570 = vmatpush1.msra.mxu0 0.0
        %571 = vmatprep.subr.mxu0 0.0
        %572 = vmatpush1.msra.mxu0 0.0
        %573 = vmatprep.subr.mxu0 0.0
        %574 = vmatpush1.msra.mxu0 0.0
        %575 = vmatprep.subr.mxu0 0.0
        %576 = vmatpush1.msra.mxu0 0.0
        %577 = vmatprep.subr.mxu0 0.0
        %578 = vmatpush1.msra.mxu0 0.0
        %579 = vmatprep.subr.mxu0 0.0
        %580 = vmatpush1.msra.mxu0 0.0
        %581 = vmatprep.subr.mxu0 0.0
        %582 = vmatpush1.msra.mxu0 0.0
        %583 = vmatprep.subr.mxu0 0.0
        %584 = vmatpush1.msra.mxu0 0.0
        %585 = vmatprep.subr.mxu0 0.0
        %586 = vmatpush1.msra.mxu0 0.0
        %587 = vmatprep.subr.mxu0 0.0
        %588 = vmatpush1.msra.mxu0 0.0
        %589 = vmatprep.subr.mxu0 0.0
        %590 = vmatpush1.msra.mxu0 %v472
        %591 = vmatprep.subr.mxu0 0.0
        %592 = vmatpush1.msra.mxu0 %v471
        %593 = vmatprep.subr.mxu0 0.0
        %594 = vmatpush1.msra.mxu0 %v470
        %595 = vmatprep.subr.mxu0 0.0
        %596 = vmatpush1.msra.mxu0 %v469
        %597 = vmatprep.subr.mxu0 0.0
        %598 = vmatpush2.msra.mxu0 0.0
        %599 = vmatprep.subr.mxu0 0.0
        %600 = vmatpush2.msra.mxu0 0.0
        %601 = vmatprep.subr.mxu0 0.0
        %602 = vmatpush2.msra.mxu0 0.0
        %603 = vmatprep.subr.mxu0 0.0
        %604 = vmatpush2.msra.mxu0 0.0
        %605 = vmatprep.subr.mxu0 0.0
        %606 = vmatpush2.msra.mxu0 0.0
        %607 = vmatprep.subr.mxu0 0.0
        %608 = vmatpush2.msra.mxu0 0.0
        %609 = vmatprep.subr.mxu0 0.0
        %610 = vmatpush2.msra.mxu0 0.0
        %611 = vmatprep.subr.mxu0 0.0
        %612 = vmatpush2.msra.mxu0 0.0
        %613 = vmatprep.subr.mxu0 0.0
        %614 = vmatpush2.msra.mxu0 0.0
        %615 = vmatprep.subr.mxu0 0.0
        %616 = vmatpush2.msra.mxu0 0.0
        %617 = vmatprep.subr.mxu0 0.0
        %618 = vmatpush2.msra.mxu0 0.0
        %619 = vmatprep.subr.mxu0 0.0
        %620 = vmatpush2.msra.mxu0 0.0
        %621 = vmatprep.subr.mxu0 0.0
        %622 = vmatpush2.msra.mxu0 0.0
        %623 = vmatprep.subr.mxu0 0.0
        %624 = vmatpush2.msra.mxu0 0.0
        %625 = vmatprep.subr.mxu0 0.0
        %626 = vmatpush2.msra.mxu0 0.0
        %627 = vmatprep.subr.mxu0 0.0
        %628 = vmatpush2.msra.mxu0 0.0
        %629 = vmatprep.mubr.f32.mxu0 0.0
        %630 = vmatmul.mubr.f32.gmra.mxu0 %v560
        %v631 = vpop.f32.mrf.mxu0
        %v632 = vadd.f32 %v551, %v631
        %v633 = vpop.f32.mrf.mxu0
        %634 = vmatprep.mubr.f32.mxu0 0.0
        %635 = vmatmul.mubr.f32.gmra.mxu0 %v563
        %v636 = vpop.f32.mrf.mxu0
        %v637 = vadd.f32 %v556, %v636
        %v638 = vpop.f32.mrf.mxu0
        %639 = vdwg.mxu0
        %v640 = vld [vmem:[%s5] sm:$0x1]
        %v642 = vlaneseq
        %v643 = vshrl.u32 %v642, 7
        %v644 = vsub.s32 0, %v643
        %v645 = vrot.slane %v640, %v644
        %v647 = vadd.f32 %v632, %v645
        %v648 = vadd.f32 %v637, %v645
        %v649 = vmax.f32 %v647, 0.0
        %v650 = vmax.f32 %v648, 0.0
        %v651 = vld [vmem:[%s6] sm:$0xff]
        %v652 = vld [vmem:[%s6 + $0x8] sm:$0xff]
        %v653 = vld [vmem:[%s6 + $0x10] sm:$0xff]
        %v654 = vld [vmem:[%s6 + $0x18] sm:$0xff]
        %v655 = vld [vmem:[%s7] sm:$0x1]
        %v657 = vlaneseq
        %v658 = vshrl.u32 %v657, 7
        %v659 = vsub.s32 0, %v658
        %v660 = vrot.slane %v655, %v659
        %v663 = vsel %vm477, %v649, 0
        %v666 = vsel %vm477, %v650, 0
        %668 = vmatprep.subr.mxu0 0.0
        %669 = vmatpush1.msra.mxu0 0.0
        %670 = vmatprep.subr.mxu0 0.0
        %671 = vmatpush1.msra.mxu0 0.0
        %672 = vmatprep.subr.mxu0 0.0
        %673 = vmatpush1.msra.mxu0 0.0
        %674 = vmatprep.subr.mxu0 0.0
        %675 = vmatpush1.msra.mxu0 0.0
        %676 = vmatprep.subr.mxu0 0.0
        %677 = vmatpush1.msra.mxu0 0.0
        %678 = vmatprep.subr.mxu0 0.0
        %679 = vmatpush1.msra.mxu0 0.0
        %680 = vmatprep.subr.mxu0 0.0
        %681 = vmatpush1.msra.mxu0 0.0
        %682 = vmatprep.subr.mxu0 0.0
        %683 = vmatpush1.msra.mxu0 0.0
        %684 = vmatprep.subr.mxu0 0.0
        %685 = vmatpush1.msra.mxu0 0.0
        %686 = vmatprep.subr.mxu0 0.0
        %687 = vmatpush1.msra.mxu0 0.0
        %688 = vmatprep.subr.mxu0 0.0
        %689 = vmatpush1.msra.mxu0 0.0
        %690 = vmatprep.subr.mxu0 0.0
        %691 = vmatpush1.msra.mxu0 0.0
        %692 = vmatprep.subr.mxu0 0.0
        %693 = vmatpush1.msra.mxu0 %v654
        %694 = vmatprep.subr.mxu0 0.0
        %695 = vmatpush1.msra.mxu0 %v653
        %696 = vmatprep.subr.mxu0 0.0
        %697 = vmatpush1.msra.mxu0 %v652
        %698 = vmatprep.subr.mxu0 0.0
        %699 = vmatpush1.msra.mxu0 %v651
        %700 = vmatprep.subr.mxu0 0.0
        %701 = vmatpush2.msra.mxu0 0.0
        %702 = vmatprep.subr.mxu0 0.0
        %703 = vmatpush2.msra.mxu0 0.0
        %704 = vmatprep.subr.mxu0 0.0
        %705 = vmatpush2.msra.mxu0 0.0
        %706 = vmatprep.subr.mxu0 0.0
        %707 = vmatpush2.msra.mxu0 0.0
        %708 = vmatprep.subr.mxu0 0.0
        %709 = vmatpush2.msra.mxu0 0.0
        %710 = vmatprep.subr.mxu0 0.0
        %711 = vmatpush2.msra.mxu0 0.0
        %712 = vmatprep.subr.mxu0 0.0
        %713 = vmatpush2.msra.mxu0 0.0
        %714 = vmatprep.subr.mxu0 0.0
        %715 = vmatpush2.msra.mxu0 0.0
        %716 = vmatprep.subr.mxu0 0.0
        %717 = vmatpush2.msra.mxu0 0.0
        %718 = vmatprep.subr.mxu0 0.0
        %719 = vmatpush2.msra.mxu0 0.0
        %720 = vmatprep.subr.mxu0 0.0
        %721 = vmatpush2.msra.mxu0 0.0
        %722 = vmatprep.subr.mxu0 0.0
        %723 = vmatpush2.msra.mxu0 0.0
        %724 = vmatprep.subr.mxu0 0.0
        %725 = vmatpush2.msra.mxu0 0.0
        %726 = vmatprep.subr.mxu0 0.0
        %727 = vmatpush2.msra.mxu0 0.0
        %728 = vmatprep.subr.mxu0 0.0
        %729 = vmatpush2.msra.mxu0 0.0
        %730 = vmatprep.subr.mxu0 0.0
        %731 = vmatpush2.msra.mxu0 0.0
        %732 = vmatprep.mubr.f32.mxu0 0.0
        %733 = vmatmul.mubr.f32.gmra.mxu0 %v663
        %v734 = vpop.f32.mrf.mxu0
        %v735 = vadd.f32 %v660, %v734
        %v736 = vpop.f32.mrf.mxu0
        %737 = vmatprep.mubr.f32.mxu0 0.0
        %738 = vmatmul.mubr.f32.gmra.mxu0 %v666
        %v739 = vpop.f32.mrf.mxu0
        %v740 = vadd.f32 %v660, %v739
        %v741 = vpop.f32.mrf.mxu0
        %742 = vdwg.mxu0
        %743 = vst [vmem:[%s351] sm:$0xff] %v735
        %744 = vst [vmem:[%s351 + $0x8] sm:$0xff] %v740
        %s745 = sand.u32 %s203, 1
        %s746 = scalar_lea.sflag [#allocation4], %s745
        %s747 = sand.u32 %s203, 1
        %s748 = smul.addr %s747, 16
        %s749 = scalar_lea.vmem [#allocation3], %s748
        // Predicated region
        $region91: #{mlp_forward.1} parent=85 // pred_check
          %p750 = pneg %p213
        $region92: #{mlp_forward.1} parent=85 // pred_check_branch
          %752 = sbr.rel (%p750) target = $region94
        $region93: #{mlp_forward.1} parent=85 // pred_region
          %s753 = smul.u32 2, %s22
          %s755 = ssub.s32 256, 256
          %756 = vsyncadd %s746, %s755
          %s757 = smul.addr %s753, 128
          %s758 = scalar_lea.hbm %s8, %s757
          %s759 = sshll.u32 %s749, 4
          %s760 = int_to_ptr.vmem [resolvable:$true] %s759
          %765 = dma.vmem_to_hbm [thread:$0]  %s760, 256, %s758, %s746, 128, 128, 8
        $region94: #{mlp_forward.1} parent=85 // pred_fallthru
          _
      $region86: #{mlp_forward.1} parent=5 // pred_fallthru
        _
      %p766 = scmp.le.s32.totalorder 2, %s17
      // Predicated region
      $region95: #{mlp_forward.1} parent=5 // pred_check
        %p767 = pneg %p766
      $region96: #{mlp_forward.1} parent=5 // pred_check_branch
        %769 = sbr.rel (%p767) target = $region98
      $region97: #{mlp_forward.1} parent=5 // pred_region
        %s770 = ssub.s32 %s17, 2
        // Predicated region
        $region99: #{mlp_forward.1} parent=97 // pred_check
          %p771 = pneg %p219
        $region100: #{mlp_forward.1} parent=97 // pred_check_branch
          %773 = sbr.rel (%p771) target = $region102
        $region101: #{mlp_forward.1} parent=97 // pred_region
          %s774 = sand.u32 %s204, 1
          %s775 = scalar_lea.sflag [#allocation4], %s774
          %s776 = sand.u32 %s204, 1
          %s777 = smul.addr %s776, 16
          %s778 = scalar_lea.vmem [#allocation3], %s777
          %779 = dma.done %s775, 256
        $region102: #{mlp_forward.1} parent=97 // pred_fallthru
          _
      $region98: #{mlp_forward.1} parent=5 // pred_fallthru
        _
    $region6: #{mlp_forward.1} parent=1 // loop_footer
      %s21 = sadd.s32 1, %s17
    $region7: #{mlp_forward.1} parent=1 // loop_footer_branch
      %16 = sbr.rel target = $region3
    $region8: #{mlp_forward.1} parent=1 // loop_exit
      _
    %780 = vsyncpa [#allocation4], 1
    %s781 = scalar_lea.sflag [#allocation4], 1
    %782 = vsyncpa %s781, 1

</llo_original>
